<compile_context>
chip_gen: v7x
topology: tpu7x:2x2x1
jax: 0.10.0
libtpu: 0.0.40
codegen_flags: <defaults>
</compile_context>

<pallas_src>
import functools

import jax
import jax.numpy as jnp
from jax.experimental import pallas as pl
from jax.experimental.pallas import tpu as pltpu

LANE = 128


def _round_up(a, b):
    return (a + b - 1) // b * b


def _leaky_relu(x, slope=0.2):
    return jnp.where(x > 0, x, slope * x)


def decoder_kernel(x_ref, w1_ref, w2_ref, w3_ref, b_ref, o_ref):
    # x_ref : (TB, L)      activation tile (bf16 or f32), unpadded latent width
    # w1_ref: (L,  P)      FC_hidden weight   (resident in VMEM)
    # w2_ref: (P,  P)      FC_hidden2 weight  (resident)
    # w3_ref: (P,  P)      FC_output weight   (resident)
    # b_ref : (3,  P) f32  packed biases      (resident)
    # o_ref : (TB, P) f32  lane-dense output tile
    x = x_ref[...]
    b = b_ref[...]

    # FC_hidden + LeakyReLU(0.2)   (MXU matmul, f32 accumulate)
    h = jnp.dot(x, w1_ref[...], preferred_element_type=jnp.float32)
    h = _leaky_relu(h + b[0:1, :])

    # FC_hidden2 + LeakyReLU(0.2)
    h = jnp.dot(h.astype(w2_ref.dtype), w2_ref[...],
                preferred_element_type=jnp.float32)
    h = _leaky_relu(h + b[1:2, :])

    # FC_output + sigmoid: exp and the divide both go to the EUP slot;
    # clamp the approx-reciprocal overshoot so the output stays in [0, 1].
    y = jnp.dot(h.astype(w3_ref.dtype), w3_ref[...],
                preferred_element_type=jnp.float32)
    y = y + b[2:3, :]
    s = pl.reciprocal(1.0 + jnp.exp(-y), approx=True)
    o_ref[...] = jnp.minimum(s, 1.0)


@functools.partial(
    jax.jit, static_argnames=("output_dim", "block_b", "use_bf16_matmul"))
def decoder_forward(x, w1, w2, w3, b_all, *, output_dim,
                    block_b=512, use_bf16_matmul=True):
    """x: (B, latent_dim) f32.  w1: (L, P), w2/w3: (P, P), b_all: (3, P) f32."""
    B, latent_dim = x.shape
    P = w2.shape[-1]
    assert w1.shape == (latent_dim, P)
    assert w3.shape == (P, P) and b_all.shape == (3, P)

    # Effective batch tile: multiple of 8 sublanes, no larger than needed so
    # the small-batch case runs with grid=(1,).
    tb = min(block_b, _round_up(B, 8))
    B_pad = _round_up(B, tb)

    mm_dtype = jnp.bfloat16 if use_bf16_matmul else jnp.float32
    itemsize = 2 if use_bf16_matmul else 4

    # Only the batch axis is padded (a tiny fused pad+cast over B_pad x L);
    # no feature-axis zero pad of x ever hits HBM.
    x_in = jnp.pad(x, ((0, B_pad - B), (0, 0))).astype(mm_dtype)
    w1_in = w1.astype(mm_dtype)
    w2_in = w2.astype(mm_dtype)
    w3_in = w3.astype(mm_dtype)

    grid = (B_pad // tb,)

    flops = 2 * B_pad * (latent_dim * P + P * P + P * P)
    bytes_accessed = (
        B_pad * latent_dim * itemsize            # x
        + (latent_dim * P + 2 * P * P) * itemsize  # weights (resident, 1 DMA)
        + 3 * P * 4                               # biases
        + B_pad * P * 4)                          # output
    cost = pl.CostEstimate(flops=flops,
                           transcendentals=B_pad * P,
                           bytes_accessed=bytes_accessed)

    # VMEM budget (worst case, f32, block_b=512): in+out tiles double-buffered
    # ~= 2*(512*16 + 512*128)*4 B ~ 0.6 MiB, weights ~0.2 MiB -> fits every
    # generation's default scoped limit (16/32 MiB) with huge headroom.
    out = pl.pallas_call(
        decoder_kernel,
        out_shape=jax.ShapeDtypeStruct((B_pad, P), jnp.float32),
        grid_spec=pltpu.PrefetchScalarGridSpec(
            num_scalar_prefetch=0,
            grid=grid,
            in_specs=[
                # activations: batch-tiled, pipelined across the grid; last
                # block dim equals the full (unpadded) latent width -> legal.
                pl.BlockSpec((tb, latent_dim), lambda i: (i, 0)),
                # weights / biases: constant index_map -> fetched once and
                # held resident in VMEM across all batch tiles.
                pl.BlockSpec((latent_dim, P), lambda i: (0, 0)),
                pl.BlockSpec((P, P), lambda i: (0, 0)),
                pl.BlockSpec((P, P), lambda i: (0, 0)),
                pl.BlockSpec((3, P), lambda i: (0, 0)),
            ],
            out_specs=pl.BlockSpec((tb, P), lambda i: (i, 0)),
        ),
        compiler_params=pltpu.CompilerParams(
            # batch grid axis shards across TensorCores (v7x megacore)
            dimension_semantics=("parallel",),
        ),
        cost_estimate=cost,
    )(x_in, w1_in, w2_in, w3_in, b_all)

    # Strip batch padding and padded output lanes in the wrapper; the kernel's
    # store itself stays lane-dense at width P.
    return out[:B, :output_dim]


def init_params(key, latent_dim, hidden_dim, output_dim, lane=LANE):
    """Deterministic synthetic init (PyTorch Linear uniform scale).

    Weights stored (in_features, out_features): kernel computes x @ W + b,
    equivalent to PyTorch's x @ W.T + b.  Hidden/output feature axes are
    zero-padded to a common lane-dense width P (multiple of 128); the latent
    (input) axis of W1 stays unpadded.
    """
    P = max(_round_up(hidden_dim, lane), _round_up(output_dim, lane))

    ks = jax.random.split(key, 6)

    def lin(kw, kb, fan_in, fan_out):
        bound = 1.0 / float(jnp.sqrt(fan_in))
        w = jax.random.uniform(kw, (fan_in, fan_out), jnp.float32, -bound, bound)
        b = jax.random.uniform(kb, (fan_out,), jnp.float32, -bound, bound)
        return w, b

    w1, b1 = lin(ks[0], ks[1], latent_dim, hidden_dim)
    w2, b2 = lin(ks[2], ks[3], hidden_dim, hidden_dim)
    w3, b3 = lin(ks[4], ks[5], hidden_dim, output_dim)

    def pad_w(w, rows, cols):
        return jnp.zeros((rows, cols), jnp.float32).at[: w.shape[0], : w.shape[1]].set(w)

    def pad_b(b):
        return jnp.zeros((P,), jnp.float32).at[: b.shape[0]].set(b)

    return {
        "w1": pad_w(w1, latent_dim, P),   # (L, P)
        "w2": pad_w(w2, P, P),            # (P, P)
        "w3": pad_w(w3, P, P),            # (P, P)
        "b_all": jnp.stack([pad_b(b1), pad_b(b2), pad_b(b3)]),   # (3, P)
        # raw (unpadded) copies only for the pure-JAX reference check
        "raw": {"w1": w1, "b1": b1, "w2": w2, "b2": b2, "w3": w3, "b3": b3},
    }


def _reference(x, raw):
    # NOTE: the PyTorch Decoder uses nn.LeakyReLU(0.2) explicitly -> slope 0.2.
    h = x @ raw["w1"] + raw["b1"]
    h = jnp.where(h > 0, h, 0.2 * h)
    h = h @ raw["w2"] + raw["b2"]
    h = jnp.where(h > 0, h, 0.2 * h)
    return jax.nn.sigmoid(h @ raw["w3"] + raw["b3"])


if __name__ == "__main__":
    latent_dim, hidden_dim, output_dim = 16, 32, 64
    batch = 256

    key = jax.random.PRNGKey(0)
    k_x, k_p = jax.random.split(key)

    x = jax.random.normal(k_x, (batch, latent_dim), dtype=jnp.float32)
    params = init_params(k_p, latent_dim, hidden_dim, output_dim)
    ref_out = _reference(x, params["raw"])

    # Default path: bf16 MXU operands, f32 accumulation / elementwise.
    out_bf16 = decoder_forward(x, params["w1"], params["w2"], params["w3"],
                               params["b_all"], output_dim=output_dim,
                               block_b=512, use_bf16_matmul=True)
    out_bf16 = jax.block_until_ready(out_bf16)
    assert out_bf16.shape == (batch, output_dim)
    assert bool(jnp.all((out_bf16 >= 0.0) & (out_bf16 <= 1.0)))
    assert bool(jnp.allclose(out_bf16, ref_out, atol=5e-2))

    # f32 path: tight agreement (approx EUP reciprocal in the sigmoid bounds
    # the error at ~1e-4 relative, so compare at 2e-3).
    out_f32 = decoder_forward(x, params["w1"], params["w2"], params["w3"],
                              params["b_all"], output_dim=output_dim,
                              block_b=512, use_bf16_matmul=False)
    out_f32 = jax.block_until_ready(out_f32)
    assert out_f32.shape == (batch, output_dim)
    assert bool(jnp.all((out_f32 >= 0.0) & (out_f32 <= 1.0)))
    assert bool(jnp.allclose(out_f32, ref_out, atol=2e-3, rtol=2e-3))

    print("KERNEL_OK")
</pallas_src>

<mosaic_0001>
module attributes {stable_mosaic.version = 11 : i64} {
  func.func @decoder_kernel(%arg0: i32, %arg1: memref<256x16xbf16, #tpu.memory_space<vmem>>, %arg2: memref<16x128xbf16, #tpu.memory_space<vmem>>, %arg3: memref<128x128xbf16, #tpu.memory_space<vmem>>, %arg4: memref<128x128xbf16, #tpu.memory_space<vmem>>, %arg5: memref<3x128xf32, #tpu.memory_space<vmem>>, %arg6: memref<256x128xf32, #tpu.memory_space<vmem>>) attributes {dimension_semantics = [#tpu.dimension_semantics<parallel>], iteration_bounds = array<i64: 1>, scalar_prefetch = 0 : i64, scratch_operands = 0 : i64, tpu.core_type = #tpu.core_type<tc>, window_params = [{transform_indices = @transform_0, window_bounds = array<i64: 256, 16>}, {pipeline_mode = #tpu.pipeline_mode<synchronous>, transform_indices = @transform_1, window_bounds = array<i64: 16, 128>}, {pipeline_mode = #tpu.pipeline_mode<synchronous>, transform_indices = @transform_2, window_bounds = array<i64: 128, 128>}, {pipeline_mode = #tpu.pipeline_mode<synchronous>, transform_indices = @transform_3, window_bounds = array<i64: 128, 128>}, {pipeline_mode = #tpu.pipeline_mode<synchronous>, transform_indices = @transform_4, window_bounds = array<i64: 3, 128>}, {transform_indices = @transform_5, window_bounds = array<i64: 256, 128>}]} {
    %c0 = arith.constant 0 : index
    %c0_0 = arith.constant 0 : index
    %0 = vector.load %arg1[%c0, %c0_0] : memref<256x16xbf16, #tpu.memory_space<vmem>>, vector<256x16xbf16>
    %c0_1 = arith.constant 0 : index
    %c0_2 = arith.constant 0 : index
    %1 = vector.load %arg5[%c0_1, %c0_2] : memref<3x128xf32, #tpu.memory_space<vmem>>, vector<3x128xf32>
    %c0_3 = arith.constant 0 : index
    %c0_4 = arith.constant 0 : index
    %2 = vector.load %arg2[%c0_3, %c0_4] : memref<16x128xbf16, #tpu.memory_space<vmem>>, vector<16x128xbf16>
    %cst = arith.constant dense<0.000000e+00> : vector<256x128xf32>
    %3 = tpu.matmul %0, %2, %cst {dimension_numbers = #tpu.dot_dimension_numbers<[1], [0], [0], [1], [0, 0, 1, 1], [], []>} : vector<256x16xbf16>, vector<16x128xbf16>, vector<256x128xf32> -> vector<256x128xf32>
    %4 = vector.extract_strided_slice %1 {offsets = [0, 0], sizes = [1, 128], strides = [1, 1]} : vector<3x128xf32> to vector<1x128xf32>
    %5 = vector.broadcast %4 : vector<1x128xf32> to vector<256x128xf32>
    %6 = arith.addf %3, %5 : vector<256x128xf32>
    %cst_5 = arith.constant 0.000000e+00 : f32
    %7 = vector.broadcast %cst_5 : f32 to vector<256x128xf32>
    %8 = arith.cmpf ogt, %6, %7 : vector<256x128xf32>
    %cst_6 = arith.constant 2.000000e-01 : f32
    %9 = vector.broadcast %cst_6 : f32 to vector<256x128xf32>
    %10 = arith.mulf %9, %6 : vector<256x128xf32>
    %11 = arith.select %8, %6, %10 : vector<256x128xi1>, vector<256x128xf32>
    %12 = arith.truncf %11 : vector<256x128xf32> to vector<256x128xbf16>
    %c0_7 = arith.constant 0 : index
    %c0_8 = arith.constant 0 : index
    %13 = vector.load %arg3[%c0_7, %c0_8] : memref<128x128xbf16, #tpu.memory_space<vmem>>, vector<128x128xbf16>
    %cst_9 = arith.constant dense<0.000000e+00> : vector<256x128xf32>
    %14 = tpu.matmul %12, %13, %cst_9 {dimension_numbers = #tpu.dot_dimension_numbers<[1], [0], [0], [1], [0, 0, 1, 1], [], []>} : vector<256x128xbf16>, vector<128x128xbf16>, vector<256x128xf32> -> vector<256x128xf32>
    %15 = vector.extract_strided_slice %1 {offsets = [1, 0], sizes = [1, 128], strides = [1, 1]} : vector<3x128xf32> to vector<1x128xf32>
    %16 = vector.broadcast %15 : vector<1x128xf32> to vector<256x128xf32>
    %17 = arith.addf %14, %16 : vector<256x128xf32>
    %cst_10 = arith.constant 0.000000e+00 : f32
    %18 = vector.broadcast %cst_10 : f32 to vector<256x128xf32>
    %19 = arith.cmpf ogt, %17, %18 : vector<256x128xf32>
    %cst_11 = arith.constant 2.000000e-01 : f32
    %20 = vector.broadcast %cst_11 : f32 to vector<256x128xf32>
    %21 = arith.mulf %20, %17 : vector<256x128xf32>
    %22 = arith.select %19, %17, %21 : vector<256x128xi1>, vector<256x128xf32>
    %23 = arith.truncf %22 : vector<256x128xf32> to vector<256x128xbf16>
    %c0_12 = arith.constant 0 : index
    %c0_13 = arith.constant 0 : index
    %24 = vector.load %arg4[%c0_12, %c0_13] : memref<128x128xbf16, #tpu.memory_space<vmem>>, vector<128x128xbf16>
    %cst_14 = arith.constant dense<0.000000e+00> : vector<256x128xf32>
    %25 = tpu.matmul %23, %24, %cst_14 {dimension_numbers = #tpu.dot_dimension_numbers<[1], [0], [0], [1], [0, 0, 1, 1], [], []>} : vector<256x128xbf16>, vector<128x128xbf16>, vector<256x128xf32> -> vector<256x128xf32>
    %26 = vector.extract_strided_slice %1 {offsets = [2, 0], sizes = [1, 128], strides = [1, 1]} : vector<3x128xf32> to vector<1x128xf32>
    %27 = vector.broadcast %26 : vector<1x128xf32> to vector<256x128xf32>
    %28 = arith.addf %25, %27 : vector<256x128xf32>
    %cst_15 = arith.constant 0.000000e+00 : f32
    %29 = vector.broadcast %cst_15 : f32 to vector<256x128xf32>
    %30 = arith.subf %29, %28 : vector<256x128xf32>
    %31 = math.exp %30 : vector<256x128xf32>
    %cst_16 = arith.constant 1.000000e+00 : f32
    %32 = vector.broadcast %cst_16 : f32 to vector<256x128xf32>
    %33 = arith.addf %32, %31 : vector<256x128xf32>
    %34 = tpu.reciprocal %33 {approx = true} : vector<256x128xf32> -> vector<256x128xf32>
    %cst_17 = arith.constant 1.000000e+00 : f32
    %35 = vector.broadcast %cst_17 : f32 to vector<256x128xf32>
    %36 = arith.minimumf %34, %35 : vector<256x128xf32>
    %c0_18 = arith.constant 0 : index
    %c0_19 = arith.constant 0 : index
    %37 = vector.load %arg6[%c0_18, %c0_19] : memref<256x128xf32, #tpu.memory_space<vmem>>, vector<256x128xf32>
    tpu.vector_store %arg6[%c0_18, %c0_19], %36 {strides = array<i32>} : memref<256x128xf32, #tpu.memory_space<vmem>>, vector<256x128xf32>,
    return
  }
  func.func @transform_0(%arg0: i32) -> (i32, i32) {
    %c0_i32 = arith.constant 0 : i32
    %c0_i32_0 = arith.constant 0 : i32
    return %arg0, %c0_i32 : i32, i32
  }
  func.func @transform_1(%arg0: i32) -> (i32, i32) {
    %c0_i32 = arith.constant 0 : i32
    %c0_i32_0 = arith.constant 0 : i32
    %c0_i32_1 = arith.constant 0 : i32
    return %c0_i32, %c0_i32_0 : i32, i32
  }
  func.func @transform_2(%arg0: i32) -> (i32, i32) {
    %c0_i32 = arith.constant 0 : i32
    %c0_i32_0 = arith.constant 0 : i32
    %c0_i32_1 = arith.constant 0 : i32
    return %c0_i32, %c0_i32_0 : i32, i32
  }
  func.func @transform_3(%arg0: i32) -> (i32, i32) {
    %c0_i32 = arith.constant 0 : i32
    %c0_i32_0 = arith.constant 0 : i32
    %c0_i32_1 = arith.constant 0 : i32
    return %c0_i32, %c0_i32_0 : i32, i32
  }
  func.func @transform_4(%arg0: i32) -> (i32, i32) {
    %c0_i32 = arith.constant 0 : i32
    %c0_i32_0 = arith.constant 0 : i32
    %c0_i32_1 = arith.constant 0 : i32
    return %c0_i32, %c0_i32_0 : i32, i32
  }
  func.func @transform_5(%arg0: i32) -> (i32, i32) {
    %c0_i32 = arith.constant 0 : i32
    %c0_i32_0 = arith.constant 0 : i32
    return %arg0, %c0_i32 : i32, i32
  }
}

</mosaic_0001>

<llo_original>
// kernel: decoder_forward.1
$region0: #{decoder_forward.1}
  #allocation0 [shape = 'u32[]', space=smem, size = 0x4, offset = 0x4, fixed_abs, tag = 'smem constant byte address 0x4 - core index']
  #allocation1 [shape = 'u32[144,128]{1,0:T(1,128)}', space=vmem, size = 0x12000, scoped, tag = 'internal scratch']
  %s0 = inlined_call_operand.vmem [shape: bf16[256,16], index: 0, kind: input, shape index: {}]
  %s1 = inlined_call_operand.vmem [shape: bf16[16,128], index: 1, kind: input, shape index: {}]
  %s2 = inlined_call_operand.vmem [shape: bf16[128,128], index: 2, kind: input, shape index: {}]
  %s3 = inlined_call_operand.vmem [shape: bf16[128,128], index: 3, kind: input, shape index: {}]
  %s4 = inlined_call_operand.vmem [shape: f32[3,128], index: 4, kind: input, shape index: {}]
  %s5 = inlined_call_operand.vmem [shape: f32[256,128], index: 5, kind: output, shape index: {}]
  %s6 = sld [smem:[#allocation0]]
  $region30: #{decoder_forward.1} parent=0
    _
  %s8 = ssub.s32 1, %s6
  %s9 = scalar_select 0, %s8, %s6
  // Predicated region
  $region2: #{decoder_forward.1} parent=0 // pred_check
    _
  $region3: #{decoder_forward.1} parent=0 // pred_check_branch
    %11 = sbr.rel (0) target = $region5
  $region4: #{decoder_forward.1} parent=0 // pred_region
    _
  $region5: #{decoder_forward.1} parent=0 // pred_fallthru
    _
  // Predicated region
  $region6: #{decoder_forward.1} parent=0 // pred_check
    _
  $region7: #{decoder_forward.1} parent=0 // pred_check_branch
    %13 = sbr.rel (0) target = $region9
  $region8: #{decoder_forward.1} parent=0 // pred_region
    _
  $region9: #{decoder_forward.1} parent=0 // pred_fallthru
    _
  // Predicated region
  $region10: #{decoder_forward.1} parent=0 // pred_check
    _
  $region11: #{decoder_forward.1} parent=0 // pred_check_branch
    %15 = sbr.rel (0) target = $region13
  $region12: #{decoder_forward.1} parent=0 // pred_region
    _
  $region13: #{decoder_forward.1} parent=0 // pred_fallthru
    _
  // Predicated region
  $region14: #{decoder_forward.1} parent=0 // pred_check
    _
  $region15: #{decoder_forward.1} parent=0 // pred_check_branch
    %17 = sbr.rel (0) target = $region17
  $region16: #{decoder_forward.1} parent=0 // pred_region
    _
  $region17: #{decoder_forward.1} parent=0 // pred_fallthru
    _
  // Predicated region
  $region18: #{decoder_forward.1} parent=0 // pred_check
    _
  $region19: #{decoder_forward.1} parent=0 // pred_check_branch
    %19 = sbr.rel (0) target = $region21
  $region20: #{decoder_forward.1} parent=0 // pred_region
    _
  $region21: #{decoder_forward.1} parent=0 // pred_fallthru
    _
  %v21 = vld [vmem:[%s0] sm:$0xf]
  %v22 = vld [vmem:[%s0 + $0x4] sm:$0xf]
  %v23 = vld [vmem:[%s0 + $0x8] sm:$0xf]
  %v24 = vld [vmem:[%s0 + $0xc] sm:$0xf]
  %v25 = vld [vmem:[%s0 + $0x10] sm:$0xf]
  %v26 = vld [vmem:[%s0 + $0x14] sm:$0xf]
  %v27 = vld [vmem:[%s0 + $0x18] sm:$0xf]
  %v28 = vld [vmem:[%s0 + $0x1c] sm:$0xf]
  %v29 = vld [vmem:[%s0 + $0x20] sm:$0xf]
  %v30 = vld [vmem:[%s0 + $0x24] sm:$0xf]
  %v31 = vld [vmem:[%s0 + $0x28] sm:$0xf]
  %v32 = vld [vmem:[%s0 + $0x2c] sm:$0xf]
  %v33 = vld [vmem:[%s0 + $0x30] sm:$0xf]
  %v34 = vld [vmem:[%s0 + $0x34] sm:$0xf]
  %v35 = vld [vmem:[%s0 + $0x38] sm:$0xf]
  %v36 = vld [vmem:[%s0 + $0x3c] sm:$0xf]
  %v37 = vld [vmem:[%s0 + $0x40] sm:$0xf]
  %v38 = vld [vmem:[%s0 + $0x44] sm:$0xf]
  %v39 = vld [vmem:[%s0 + $0x48] sm:$0xf]
  %v40 = vld [vmem:[%s0 + $0x4c] sm:$0xf]
  %v41 = vld [vmem:[%s0 + $0x50] sm:$0xf]
  %v42 = vld [vmem:[%s0 + $0x54] sm:$0xf]
  %v43 = vld [vmem:[%s0 + $0x58] sm:$0xf]
  %v44 = vld [vmem:[%s0 + $0x5c] sm:$0xf]
  %v45 = vld [vmem:[%s0 + $0x60] sm:$0xf]
  %v46 = vld [vmem:[%s0 + $0x64] sm:$0xf]
  %v47 = vld [vmem:[%s0 + $0x68] sm:$0xf]
  %v48 = vld [vmem:[%s0 + $0x6c] sm:$0xf]
  %v49 = vld [vmem:[%s0 + $0x70] sm:$0xf]
  %v50 = vld [vmem:[%s0 + $0x74] sm:$0xf]
  %v51 = vld [vmem:[%s0 + $0x78] sm:$0xf]
  %v52 = vld [vmem:[%s0 + $0x7c] sm:$0xf]
  %v53 = vld [vmem:[%s4] sm:$0x7]
  %v54 = vld [vmem:[%s1] sm:$0xf]
  %v55 = vld [vmem:[%s1 + $0x4] sm:$0xf]
  %v56 = vlaneseq
  %v57 = vshrl.u32 %v56, 7
  %v58 = vsub.s32 0, %v57
  %v59 = vrot.slane %v53, %v58
  %v92 = vunpack.c.l.b16 %v21
  %v93 = vunpack.c.l.b16 %v22
  %v94 = vunpack.c.l.b16 %v23
  %v95 = vunpack.c.l.b16 %v24
  %v96 = vunpack.c.l.b16 %v25
  %v97 = vunpack.c.l.b16 %v26
  %v98 = vunpack.c.l.b16 %v27
  %v99 = vunpack.c.l.b16 %v28
  %v100 = vunpack.c.l.b16 %v29
  %v101 = vunpack.c.l.b16 %v30
  %v102 = vunpack.c.l.b16 %v31
  %v103 = vunpack.c.l.b16 %v32
  %v104 = vunpack.c.l.b16 %v33
  %v105 = vunpack.c.l.b16 %v34
  %v106 = vunpack.c.l.b16 %v35
  %v107 = vunpack.c.l.b16 %v36
  %v108 = vunpack.c.l.b16 %v37
  %v109 = vunpack.c.l.b16 %v38
  %v110 = vunpack.c.l.b16 %v39
  %v111 = vunpack.c.l.b16 %v40
  %v112 = vunpack.c.l.b16 %v41
  %v113 = vunpack.c.l.b16 %v42
  %v114 = vunpack.c.l.b16 %v43
  %v115 = vunpack.c.l.b16 %v44
  %v116 = vunpack.c.l.b16 %v45
  %v117 = vunpack.c.l.b16 %v46
  %v118 = vunpack.c.l.b16 %v47
  %v119 = vunpack.c.l.b16 %v48
  %v120 = vunpack.c.l.b16 %v49
  %v121 = vunpack.c.l.b16 %v50
  %v122 = vunpack.c.l.b16 %v51
  %v123 = vunpack.c.l.b16 %v52
  %v124 = vpack.c.b16 %v93, %v92
  %v125 = vpack.c.b16 %v95, %v94
  %v126 = vpack.c.b16 %v97, %v96
  %v127 = vpack.c.b16 %v99, %v98
  %v128 = vpack.c.b16 %v101, %v100
  %v129 = vpack.c.b16 %v103, %v102
  %v130 = vpack.c.b16 %v105, %v104
  %v131 = vpack.c.b16 %v107, %v106
  %v132 = vpack.c.b16 %v109, %v108
  %v133 = vpack.c.b16 %v111, %v110
  %v134 = vpack.c.b16 %v113, %v112
  %v135 = vpack.c.b16 %v115, %v114
  %v136 = vpack.c.b16 %v117, %v116
  %v137 = vpack.c.b16 %v119, %v118
  %v138 = vpack.c.b16 %v121, %v120
  %v139 = vpack.c.b16 %v123, %v122
  %v142 = vunpack.c.l.b16 %v54
  %v143 = vunpack.c.l.b16 %v55
  %v144 = vpack.c.b16 %v143, %v142
  %vm146 = vcmask 130048
  %v148 = vsel %vm146, %v124, 0
  %v151 = vsel %vm146, %v125, 0
  %v154 = vsel %vm146, %v126, 0
  %v157 = vsel %vm146, %v127, 0
  %v160 = vsel %vm146, %v128, 0
  %v163 = vsel %vm146, %v129, 0
  %v166 = vsel %vm146, %v130, 0
  %v169 = vsel %vm146, %v131, 0
  %v172 = vsel %vm146, %v132, 0
  %v175 = vsel %vm146, %v133, 0
  %v178 = vsel %vm146, %v134, 0
  %v181 = vsel %vm146, %v135, 0
  %v184 = vsel %vm146, %v136, 0
  %v187 = vsel %vm146, %v137, 0
  %v190 = vsel %vm146, %v138, 0
  %v193 = vsel %vm146, %v139, 0
  %195 = vmatprep.subr.bf16.mxu0 0
  %196 = vmatpush1.bf16.msra.mxu0 %v144
  %197 = vmatprep.subr.bf16.mxu0 0
  %198 = vmatpush1.bf16.msra.mxu0 0
  %199 = vmatprep.subr.bf16.mxu0 0
  %200 = vmatpush1.bf16.msra.mxu0 0
  %201 = vmatprep.subr.bf16.mxu0 0
  %202 = vmatpush1.bf16.msra.mxu0 0
  %203 = vmatprep.subr.bf16.mxu0 0
  %204 = vmatpush1.bf16.msra.mxu0 0
  %205 = vmatprep.subr.bf16.mxu0 0
  %206 = vmatpush1.bf16.msra.mxu0 0
  %207 = vmatprep.subr.bf16.mxu0 0
  %208 = vmatpush1.bf16.msra.mxu0 0
  %209 = vmatprep.subr.bf16.mxu0 0
  %210 = vmatpush1.bf16.msra.mxu0 0
  %211 = vmatprep.subr.bf16.mxu0 0
  %212 = vmatpush1.bf16.msra.mxu0 0
  %213 = vmatprep.subr.bf16.mxu0 0
  %214 = vmatpush1.bf16.msra.mxu0 0
  %215 = vmatprep.subr.bf16.mxu0 0
  %216 = vmatpush1.bf16.msra.mxu0 0
  %217 = vmatprep.subr.bf16.mxu0 0
  %218 = vmatpush1.bf16.msra.mxu0 0
  %219 = vmatprep.subr.bf16.mxu0 0
  %220 = vmatpush1.bf16.msra.mxu0 0
  %221 = vmatprep.subr.bf16.mxu0 0
  %222 = vmatpush1.bf16.msra.mxu0 0
  %223 = vmatprep.subr.bf16.mxu0 0
  %224 = vmatpush1.bf16.msra.mxu0 0
  %225 = vmatprep.subr.bf16.mxu0 0
  %226 = vmatpush1.bf16.msra.mxu0 0
  %227 = vmatprep.mubr.bf16.mxu0 0
  %228 = vmatmul.mubr.bf16.gmra.mrb[0].mxu0 %v148
  %v229 = vpop.f32.mrb[0].mxu0
  %v230 = vadd.f32 %v59, %v229
  %v231 = vpop.f32.mrb[0].mxu0
  %v232 = vpop.f32.mrb[0].mxu0
  %v233 = vadd.f32 %v59, %v232
  %v234 = vpop.f32.mrb[0].mxu0
  %235 = vmatprep.mubr.bf16.mxu0 0
  %236 = vmatmul.mubr.bf16.gmra.mrb[0].mxu0 %v151
  %v237 = vpop.f32.mrb[0].mxu0
  %v238 = vadd.f32 %v59, %v237
  %v239 = vpop.f32.mrb[0].mxu0
  %v240 = vpop.f32.mrb[0].mxu0
  %v241 = vadd.f32 %v59, %v240
  %v242 = vpop.f32.mrb[0].mxu0
  %243 = vmatprep.mubr.bf16.mxu0 0
  %244 = vmatmul.mubr.bf16.gmra.mrb[0].mxu0 %v154
  %v245 = vpop.f32.mrb[0].mxu0
  %v246 = vadd.f32 %v59, %v245
  %v247 = vpop.f32.mrb[0].mxu0
  %v248 = vpop.f32.mrb[0].mxu0
  %v249 = vadd.f32 %v59, %v248
  %v250 = vpop.f32.mrb[0].mxu0
  %251 = vmatprep.mubr.bf16.mxu0 0
  %252 = vmatmul.mubr.bf16.gmra.mrb[0].mxu0 %v157
  %v253 = vpop.f32.mrb[0].mxu0
  %v254 = vadd.f32 %v59, %v253
  %v255 = vpop.f32.mrb[0].mxu0
  %v256 = vpop.f32.mrb[0].mxu0
  %v257 = vadd.f32 %v59, %v256
  %v258 = vpop.f32.mrb[0].mxu0
  %259 = vmatprep.mubr.bf16.mxu0 0
  %260 = vmatmul.mubr.bf16.gmra.mrb[0].mxu0 %v160
  %v261 = vpop.f32.mrb[0].mxu0
  %v262 = vadd.f32 %v59, %v261
  %v263 = vpop.f32.mrb[0].mxu0
  %v264 = vpop.f32.mrb[0].mxu0
  %v265 = vadd.f32 %v59, %v264
  %v266 = vpop.f32.mrb[0].mxu0
  %267 = vmatprep.mubr.bf16.mxu0 0
  %268 = vmatmul.mubr.bf16.gmra.mrb[0].mxu0 %v163
  %v269 = vpop.f32.mrb[0].mxu0
  %v270 = vadd.f32 %v59, %v269
  %v271 = vpop.f32.mrb[0].mxu0
  %v272 = vpop.f32.mrb[0].mxu0
  %v273 = vadd.f32 %v59, %v272
  %v274 = vpop.f32.mrb[0].mxu0
  %275 = vmatprep.mubr.bf16.mxu0 0
  %276 = vmatmul.mubr.bf16.gmra.mrb[0].mxu0 %v166
  %v277 = vpop.f32.mrb[0].mxu0
  %v278 = vadd.f32 %v59, %v277
  %v279 = vpop.f32.mrb[0].mxu0
  %v280 = vpop.f32.mrb[0].mxu0
  %v281 = vadd.f32 %v59, %v280
  %v282 = vpop.f32.mrb[0].mxu0
  %283 = vmatprep.mubr.bf16.mxu0 0
  %284 = vmatmul.mubr.bf16.gmra.mrb[0].mxu0 %v169
  %v285 = vpop.f32.mrb[0].mxu0
  %v286 = vadd.f32 %v59, %v285
  %v287 = vpop.f32.mrb[0].mxu0
  %v288 = vpop.f32.mrb[0].mxu0
  %v289 = vadd.f32 %v59, %v288
  %v290 = vpop.f32.mrb[0].mxu0
  %291 = vmatprep.mubr.bf16.mxu0 0
  %292 = vmatmul.mubr.bf16.gmra.mrb[0].mxu0 %v172
  %v293 = vpop.f32.mrb[0].mxu0
  %v294 = vadd.f32 %v59, %v293
  %v295 = vpop.f32.mrb[0].mxu0
  %v296 = vpop.f32.mrb[0].mxu0
  %v297 = vadd.f32 %v59, %v296
  %v298 = vpop.f32.mrb[0].mxu0
  %299 = vmatprep.mubr.bf16.mxu0 0
  %300 = vmatmul.mubr.bf16.gmra.mrb[0].mxu0 %v175
  %v301 = vpop.f32.mrb[0].mxu0
  %v302 = vadd.f32 %v59, %v301
  %v303 = vpop.f32.mrb[0].mxu0
  %v304 = vpop.f32.mrb[0].mxu0
  %v305 = vadd.f32 %v59, %v304
  %v306 = vpop.f32.mrb[0].mxu0
  %307 = vmatprep.mubr.bf16.mxu0 0
  %308 = vmatmul.mubr.bf16.gmra.mrb[0].mxu0 %v178
  %v309 = vpop.f32.mrb[0].mxu0
  %v310 = vadd.f32 %v59, %v309
  %v311 = vpop.f32.mrb[0].mxu0
  %v312 = vpop.f32.mrb[0].mxu0
  %v313 = vadd.f32 %v59, %v312
  %v314 = vpop.f32.mrb[0].mxu0
  %315 = vmatprep.mubr.bf16.mxu0 0
  %316 = vmatmul.mubr.bf16.gmra.mrb[0].mxu0 %v181
  %v317 = vpop.f32.mrb[0].mxu0
  %v318 = vadd.f32 %v59, %v317
  %v319 = vpop.f32.mrb[0].mxu0
  %v320 = vpop.f32.mrb[0].mxu0
  %v321 = vadd.f32 %v59, %v320
  %v322 = vpop.f32.mrb[0].mxu0
  %323 = vmatprep.mubr.bf16.mxu0 0
  %324 = vmatmul.mubr.bf16.gmra.mrb[0].mxu0 %v184
  %v325 = vpop.f32.mrb[0].mxu0
  %v326 = vadd.f32 %v59, %v325
  %v327 = vpop.f32.mrb[0].mxu0
  %v328 = vpop.f32.mrb[0].mxu0
  %v329 = vadd.f32 %v59, %v328
  %v330 = vpop.f32.mrb[0].mxu0
  %331 = vmatprep.mubr.bf16.mxu0 0
  %332 = vmatmul.mubr.bf16.gmra.mrb[0].mxu0 %v187
  %v333 = vpop.f32.mrb[0].mxu0
  %v334 = vadd.f32 %v59, %v333
  %v335 = vpop.f32.mrb[0].mxu0
  %v336 = vpop.f32.mrb[0].mxu0
  %v337 = vadd.f32 %v59, %v336
  %v338 = vpop.f32.mrb[0].mxu0
  %339 = vmatprep.mubr.bf16.mxu0 0
  %340 = vmatmul.mubr.bf16.gmra.mrb[0].mxu0 %v190
  %v341 = vpop.f32.mrb[0].mxu0
  %v342 = vadd.f32 %v59, %v341
  %v343 = vpop.f32.mrb[0].mxu0
  %v344 = vpop.f32.mrb[0].mxu0
  %v345 = vadd.f32 %v59, %v344
  %v346 = vpop.f32.mrb[0].mxu0
  %347 = vmatprep.mubr.bf16.mxu0 0
  %348 = vmatmul.mubr.bf16.gmra.mrb[0].mxu0 %v193
  %v349 = vpop.f32.mrb[0].mxu0
  %v350 = vadd.f32 %v59, %v349
  %v351 = vpop.f32.mrb[0].mxu0
  %v352 = vpop.f32.mrb[0].mxu0
  %v353 = vadd.f32 %v59, %v352
  %v354 = vpop.f32.mrb[0].mxu0
  %355 = vdwg.mxu0
  %vm356 = vcmp.gt.f32.partialorder %v230, 0.0
  %vm357 = vcmp.gt.f32.partialorder %v233, 0.0
  %vm358 = vcmp.gt.f32.partialorder %v238, 0.0
  %vm359 = vcmp.gt.f32.partialorder %v241, 0.0
  %vm360 = vcmp.gt.f32.partialorder %v246, 0.0
  %vm361 = vcmp.gt.f32.partialorder %v249, 0.0
  %vm362 = vcmp.gt.f32.partialorder %v254, 0.0
  %vm363 = vcmp.gt.f32.partialorder %v257, 0.0
  %vm364 = vcmp.gt.f32.partialorder %v262, 0.0
  %vm365 = vcmp.gt.f32.partialorder %v265, 0.0
  %vm366 = vcmp.gt.f32.partialorder %v270, 0.0
  %vm367 = vcmp.gt.f32.partialorder %v273, 0.0
  %vm368 = vcmp.gt.f32.partialorder %v278, 0.0
  %vm369 = vcmp.gt.f32.partialorder %v281, 0.0
  %vm370 = vcmp.gt.f32.partialorder %v286, 0.0
  %vm371 = vcmp.gt.f32.partialorder %v289, 0.0
  %vm372 = vcmp.gt.f32.partialorder %v294, 0.0
  %vm373 = vcmp.gt.f32.partialorder %v297, 0.0
  %vm374 = vcmp.gt.f32.partialorder %v302, 0.0
  %vm375 = vcmp.gt.f32.partialorder %v305, 0.0
  %vm376 = vcmp.gt.f32.partialorder %v310, 0.0
  %vm377 = vcmp.gt.f32.partialorder %v313, 0.0
  %vm378 = vcmp.gt.f32.partialorder %v318, 0.0
  %vm379 = vcmp.gt.f32.partialorder %v321, 0.0
  %vm380 = vcmp.gt.f32.partialorder %v326, 0.0
  %vm381 = vcmp.gt.f32.partialorder %v329, 0.0
  %vm382 = vcmp.gt.f32.partialorder %v334, 0.0
  %vm383 = vcmp.gt.f32.partialorder %v337, 0.0
  %vm384 = vcmp.gt.f32.partialorder %v342, 0.0
  %vm385 = vcmp.gt.f32.partialorder %v345, 0.0
  %vm386 = vcmp.gt.f32.partialorder %v350, 0.0
  %vm387 = vcmp.gt.f32.partialorder %v353, 0.0
  %v388 = vmul.f32 %v230, 0.2
  %v389 = vmul.f32 %v233, 0.2
  %v390 = vmul.f32 %v238, 0.2
  %v391 = vmul.f32 %v241, 0.2
  %v392 = vmul.f32 %v246, 0.2
  %v393 = vmul.f32 %v249, 0.2
  %v394 = vmul.f32 %v254, 0.2
  %v395 = vmul.f32 %v257, 0.2
  %v396 = vmul.f32 %v262, 0.2
  %v397 = vmul.f32 %v265, 0.2
  %v398 = vmul.f32 %v270, 0.2
  %v399 = vmul.f32 %v273, 0.2
  %v400 = vmul.f32 %v278, 0.2
  %v401 = vmul.f32 %v281, 0.2
  %v402 = vmul.f32 %v286, 0.2
  %v403 = vmul.f32 %v289, 0.2
  %v404 = vmul.f32 %v294, 0.2
  %v405 = vmul.f32 %v297, 0.2
  %v406 = vmul.f32 %v302, 0.2
  %v407 = vmul.f32 %v305, 0.2
  %v408 = vmul.f32 %v310, 0.2
  %v409 = vmul.f32 %v313, 0.2
  %v410 = vmul.f32 %v318, 0.2
  %v411 = vmul.f32 %v321, 0.2
  %v412 = vmul.f32 %v326, 0.2
  %v413 = vmul.f32 %v329, 0.2
  %v414 = vmul.f32 %v334, 0.2
  %v415 = vmul.f32 %v337, 0.2
  %v416 = vmul.f32 %v342, 0.2
  %v417 = vmul.f32 %v345, 0.2
  %v418 = vmul.f32 %v350, 0.2
  %v419 = vmul.f32 %v353, 0.2
  %v420 = vsel %vm356, %v230, %v388
  %v421 = vsel %vm357, %v233, %v389
  %v422 = vsel %vm358, %v238, %v390
  %v423 = vsel %vm359, %v241, %v391
  %v424 = vsel %vm360, %v246, %v392
  %v425 = vsel %vm361, %v249, %v393
  %v426 = vsel %vm362, %v254, %v394
  %v427 = vsel %vm363, %v257, %v395
  %v428 = vsel %vm364, %v262, %v396
  %v429 = vsel %vm365, %v265, %v397
  %v430 = vsel %vm366, %v270, %v398
  %v431 = vsel %vm367, %v273, %v399
  %v432 = vsel %vm368, %v278, %v400
  %v433 = vsel %vm369, %v281, %v401
  %v434 = vsel %vm370, %v286, %v402
  %v435 = vsel %vm371, %v289, %v403
  %v436 = vsel %vm372, %v294, %v404
  %v437 = vsel %vm373, %v297, %v405
  %v438 = vsel %vm374, %v302, %v406
  %v439 = vsel %vm375, %v305, %v407
  %v440 = vsel %vm376, %v310, %v408
  %v441 = vsel %vm377, %v313, %v409
  %v442 = vsel %vm378, %v318, %v410
  %v443 = vsel %vm379, %v321, %v411
  %v444 = vsel %vm380, %v326, %v412
  %v445 = vsel %vm381, %v329, %v413
  %v446 = vsel %vm382, %v334, %v414
  %v447 = vsel %vm383, %v337, %v415
  %v448 = vsel %vm384, %v342, %v416
  %v449 = vsel %vm385, %v345, %v417
  %v450 = vsel %vm386, %v350, %v418
  %v451 = vsel %vm387, %v353, %v419
  %v452 = vpack.c.bf16 %v421, %v420
  %v453 = vpack.c.bf16 %v423, %v422
  %v454 = vpack.c.bf16 %v425, %v424
  %v455 = vpack.c.bf16 %v427, %v426
  %v456 = vpack.c.bf16 %v429, %v428
  %v457 = vpack.c.bf16 %v431, %v430
  %v458 = vpack.c.bf16 %v433, %v432
  %v459 = vpack.c.bf16 %v435, %v434
  %v460 = vpack.c.bf16 %v437, %v436
  %v461 = vpack.c.bf16 %v439, %v438
  %v462 = vpack.c.bf16 %v441, %v440
  %v463 = vpack.c.bf16 %v443, %v442
  %v464 = vpack.c.bf16 %v445, %v444
  %v465 = vpack.c.bf16 %v447, %v446
  %v466 = vpack.c.bf16 %v449, %v448
  %v467 = vpack.c.bf16 %v451, %v450
  %v468 = vld [vmem:[%s2] sm:$0xf]
  %v469 = vld [vmem:[%s2 + $0x4] sm:$0xf]
  %v470 = vld [vmem:[%s2 + $0x8] sm:$0xf]
  %v471 = vld [vmem:[%s2 + $0xc] sm:$0xf]
  %v472 = vld [vmem:[%s2 + $0x10] sm:$0xf]
  %v473 = vld [vmem:[%s2 + $0x14] sm:$0xf]
  %v474 = vld [vmem:[%s2 + $0x18] sm:$0xf]
  %v475 = vld [vmem:[%s2 + $0x1c] sm:$0xf]
  %v476 = vld [vmem:[%s2 + $0x20] sm:$0xf]
  %v477 = vld [vmem:[%s2 + $0x24] sm:$0xf]
  %v478 = vld [vmem:[%s2 + $0x28] sm:$0xf]
  %v479 = vld [vmem:[%s2 + $0x2c] sm:$0xf]
  %v480 = vld [vmem:[%s2 + $0x30] sm:$0xf]
  %v481 = vld [vmem:[%s2 + $0x34] sm:$0xf]
  %v482 = vld [vmem:[%s2 + $0x38] sm:$0xf]
  %v483 = vld [vmem:[%s2 + $0x3c] sm:$0xf]
  %v484 = vlaneseq
  %v485 = vshrl.u32 %v484, 7
  %v486 = vsub.s32 1, %v485
  %v487 = vrot.slane %v53, %v486
  %v504 = vunpack.c.l.b16 %v468
  %v505 = vunpack.c.l.b16 %v469
  %v506 = vunpack.c.l.b16 %v470
  %v507 = vunpack.c.l.b16 %v471
  %v508 = vunpack.c.l.b16 %v472
  %v509 = vunpack.c.l.b16 %v473
  %v510 = vunpack.c.l.b16 %v474
  %v511 = vunpack.c.l.b16 %v475
  %v512 = vunpack.c.l.b16 %v476
  %v513 = vunpack.c.l.b16 %v477
  %v514 = vunpack.c.l.b16 %v478
  %v515 = vunpack.c.l.b16 %v479
  %v516 = vunpack.c.l.b16 %v480
  %v517 = vunpack.c.l.b16 %v481
  %v518 = vunpack.c.l.b16 %v482
  %v519 = vunpack.c.l.b16 %v483
  %v520 = vpack.c.b16 %v505, %v504
  %v521 = vpack.c.b16 %v507, %v506
  %v522 = vpack.c.b16 %v509, %v508
  %v523 = vpack.c.b16 %v511, %v510
  %v524 = vpack.c.b16 %v513, %v512
  %v525 = vpack.c.b16 %v515, %v514
  %v526 = vpack.c.b16 %v517, %v516
  %v527 = vpack.c.b16 %v519, %v518
  %536 = vmatprep.subr.bf16.mxu0 0
  %537 = vmatpush1.bf16.msra.mxu0 %v520
  %538 = vmatprep.subr.bf16.mxu0 0
  %539 = vmatpush1.bf16.msra.mxu0 %v521
  %540 = vmatprep.subr.bf16.mxu0 0
  %541 = vmatpush1.bf16.msra.mxu0 %v522
  %542 = vmatprep.subr.bf16.mxu0 0
  %543 = vmatpush1.bf16.msra.mxu0 %v523
  %544 = vmatprep.subr.bf16.mxu0 0
  %545 = vmatpush1.bf16.msra.mxu0 %v524
  %546 = vmatprep.subr.bf16.mxu0 0
  %547 = vmatpush1.bf16.msra.mxu0 %v525
  %548 = vmatprep.subr.bf16.mxu0 0
  %549 = vmatpush1.bf16.msra.mxu0 %v526
  %550 = vmatprep.subr.bf16.mxu0 0
  %551 = vmatpush1.bf16.msra.mxu0 %v527
  %552 = vmatprep.subr.bf16.mxu0 0
  %553 = vmatpush1.bf16.msra.mxu0 0
  %554 = vmatprep.subr.bf16.mxu0 0
  %555 = vmatpush1.bf16.msra.mxu0 0
  %556 = vmatprep.subr.bf16.mxu0 0
  %557 = vmatpush1.bf16.msra.mxu0 0
  %558 = vmatprep.subr.bf16.mxu0 0
  %559 = vmatpush1.bf16.msra.mxu0 0
  %560 = vmatprep.subr.bf16.mxu0 0
  %561 = vmatpush1.bf16.msra.mxu0 0
  %562 = vmatprep.subr.bf16.mxu0 0
  %563 = vmatpush1.bf16.msra.mxu0 0
  %564 = vmatprep.subr.bf16.mxu0 0
  %565 = vmatpush1.bf16.msra.mxu0 0
  %566 = vmatprep.subr.bf16.mxu0 0
  %567 = vmatpush1.bf16.msra.mxu0 0
  %568 = vmatprep.mubr.bf16.mxu0 0
  %569 = vmatmul.mubr.bf16.gmra.mrb[0].mxu0 %v452
  %v570 = vpop.f32.mrb[0].mxu0
  %v571 = vadd.f32 %v487, %v570
  %v572 = vpop.f32.mrb[0].mxu0
  %v573 = vpop.f32.mrb[0].mxu0
  %v574 = vadd.f32 %v487, %v573
  %v575 = vpop.f32.mrb[0].mxu0
  %576 = vmatprep.mubr.bf16.mxu0 0
  %577 = vmatmul.mubr.bf16.gmra.mrb[0].mxu0 %v453
  %v578 = vpop.f32.mrb[0].mxu0
  %v579 = vadd.f32 %v487, %v578
  %v580 = vpop.f32.mrb[0].mxu0
  %v581 = vpop.f32.mrb[0].mxu0
  %v582 = vadd.f32 %v487, %v581
  %v583 = vpop.f32.mrb[0].mxu0
  %584 = vmatprep.mubr.bf16.mxu0 0
  %585 = vmatmul.mubr.bf16.gmra.mrb[0].mxu0 %v454
  %v586 = vpop.f32.mrb[0].mxu0
  %v587 = vadd.f32 %v487, %v586
  %v588 = vpop.f32.mrb[0].mxu0
  %v589 = vpop.f32.mrb[0].mxu0
  %v590 = vadd.f32 %v487, %v589
  %v591 = vpop.f32.mrb[0].mxu0
  %592 = vmatprep.mubr.bf16.mxu0 0
  %593 = vmatmul.mubr.bf16.gmra.mrb[0].mxu0 %v455
  %v594 = vpop.f32.mrb[0].mxu0
  %v595 = vadd.f32 %v487, %v594
  %v596 = vpop.f32.mrb[0].mxu0
  %v597 = vpop.f32.mrb[0].mxu0
  %v598 = vadd.f32 %v487, %v597
  %v599 = vpop.f32.mrb[0].mxu0
  %600 = vmatprep.mubr.bf16.mxu0 0
  %601 = vmatmul.mubr.bf16.gmra.mrb[0].mxu0 %v456
  %v602 = vpop.f32.mrb[0].mxu0
  %v603 = vadd.f32 %v487, %v602
  %v604 = vpop.f32.mrb[0].mxu0
  %v605 = vpop.f32.mrb[0].mxu0
  %v606 = vadd.f32 %v487, %v605
  %v607 = vpop.f32.mrb[0].mxu0
  %608 = vmatprep.mubr.bf16.mxu0 0
  %609 = vmatmul.mubr.bf16.gmra.mrb[0].mxu0 %v457
  %v610 = vpop.f32.mrb[0].mxu0
  %v611 = vadd.f32 %v487, %v610
  %v612 = vpop.f32.mrb[0].mxu0
  %v613 = vpop.f32.mrb[0].mxu0
  %v614 = vadd.f32 %v487, %v613
  %v615 = vpop.f32.mrb[0].mxu0
  %616 = vmatprep.mubr.bf16.mxu0 0
  %617 = vmatmul.mubr.bf16.gmra.mrb[0].mxu0 %v458
  %v618 = vpop.f32.mrb[0].mxu0
  %v619 = vadd.f32 %v487, %v618
  %v620 = vpop.f32.mrb[0].mxu0
  %v621 = vpop.f32.mrb[0].mxu0
  %v622 = vadd.f32 %v487, %v621
  %v623 = vpop.f32.mrb[0].mxu0
  %624 = vmatprep.mubr.bf16.mxu0 0
  %625 = vmatmul.mubr.bf16.gmra.mrb[0].mxu0 %v459
  %v626 = vpop.f32.mrb[0].mxu0
  %v627 = vadd.f32 %v487, %v626
  %v628 = vpop.f32.mrb[0].mxu0
  %v629 = vpop.f32.mrb[0].mxu0
  %v630 = vadd.f32 %v487, %v629
  %v631 = vpop.f32.mrb[0].mxu0
  %632 = vmatprep.mubr.bf16.mxu0 0
  %633 = vmatmul.mubr.bf16.gmra.mrb[0].mxu0 %v460
  %v634 = vpop.f32.mrb[0].mxu0
  %v635 = vadd.f32 %v487, %v634
  %v636 = vpop.f32.mrb[0].mxu0
  %v637 = vpop.f32.mrb[0].mxu0
  %v638 = vadd.f32 %v487, %v637
  %v639 = vpop.f32.mrb[0].mxu0
  %640 = vmatprep.mubr.bf16.mxu0 0
  %641 = vmatmul.mubr.bf16.gmra.mrb[0].mxu0 %v461
  %v642 = vpop.f32.mrb[0].mxu0
  %v643 = vadd.f32 %v487, %v642
  %v644 = vpop.f32.mrb[0].mxu0
  %v645 = vpop.f32.mrb[0].mxu0
  %v646 = vadd.f32 %v487, %v645
  %v647 = vpop.f32.mrb[0].mxu0
  %648 = vmatprep.mubr.bf16.mxu0 0
  %649 = vmatmul.mubr.bf16.gmra.mrb[0].mxu0 %v462
  %v650 = vpop.f32.mrb[0].mxu0
  %v651 = vadd.f32 %v487, %v650
  %v652 = vpop.f32.mrb[0].mxu0
  %v653 = vpop.f32.mrb[0].mxu0
  %v654 = vadd.f32 %v487, %v653
  %v655 = vpop.f32.mrb[0].mxu0
  %656 = vmatprep.mubr.bf16.mxu0 0
  %657 = vmatmul.mubr.bf16.gmra.mrb[0].mxu0 %v463
  %v658 = vpop.f32.mrb[0].mxu0
  %v659 = vadd.f32 %v487, %v658
  %v660 = vpop.f32.mrb[0].mxu0
  %v661 = vpop.f32.mrb[0].mxu0
  %v662 = vadd.f32 %v487, %v661
  %v663 = vpop.f32.mrb[0].mxu0
  %664 = vmatprep.mubr.bf16.mxu0 0
  %665 = vmatmul.mubr.bf16.gmra.mrb[0].mxu0 %v464
  %v666 = vpop.f32.mrb[0].mxu0
  %v667 = vadd.f32 %v487, %v666
  %v668 = vpop.f32.mrb[0].mxu0
  %v669 = vpop.f32.mrb[0].mxu0
  %v670 = vadd.f32 %v487, %v669
  %v671 = vpop.f32.mrb[0].mxu0
  %672 = vmatprep.mubr.bf16.mxu0 0
  %673 = vmatmul.mubr.bf16.gmra.mrb[0].mxu0 %v465
  %v674 = vpop.f32.mrb[0].mxu0
  %v675 = vadd.f32 %v487, %v674
  %v676 = vpop.f32.mrb[0].mxu0
  %v677 = vpop.f32.mrb[0].mxu0
  %v678 = vadd.f32 %v487, %v677
  %v679 = vpop.f32.mrb[0].mxu0
  %680 = vmatprep.mubr.bf16.mxu0 0
  %681 = vmatmul.mubr.bf16.gmra.mrb[0].mxu0 %v466
  %v682 = vpop.f32.mrb[0].mxu0
  %v683 = vadd.f32 %v487, %v682
  %v684 = vpop.f32.mrb[0].mxu0
  %v685 = vpop.f32.mrb[0].mxu0
  %v686 = vadd.f32 %v487, %v685
  %v687 = vpop.f32.mrb[0].mxu0
  %688 = vmatprep.mubr.bf16.mxu0 0
  %689 = vmatmul.mubr.bf16.gmra.mrb[0].mxu0 %v467
  %v690 = vpop.f32.mrb[0].mxu0
  %v691 = vadd.f32 %v487, %v690
  %v692 = vpop.f32.mrb[0].mxu0
  %v693 = vpop.f32.mrb[0].mxu0
  %v694 = vadd.f32 %v487, %v693
  %v695 = vpop.f32.mrb[0].mxu0
  %696 = vdwg.mxu0
  %vm697 = vcmp.gt.f32.partialorder %v571, 0.0
  %vm698 = vcmp.gt.f32.partialorder %v574, 0.0
  %vm699 = vcmp.gt.f32.partialorder %v579, 0.0
  %vm700 = vcmp.gt.f32.partialorder %v582, 0.0
  %vm701 = vcmp.gt.f32.partialorder %v587, 0.0
  %vm702 = vcmp.gt.f32.partialorder %v590, 0.0
  %vm703 = vcmp.gt.f32.partialorder %v595, 0.0
  %vm704 = vcmp.gt.f32.partialorder %v598, 0.0
  %vm705 = vcmp.gt.f32.partialorder %v603, 0.0
  %vm706 = vcmp.gt.f32.partialorder %v606, 0.0
  %vm707 = vcmp.gt.f32.partialorder %v611, 0.0
  %vm708 = vcmp.gt.f32.partialorder %v614, 0.0
  %vm709 = vcmp.gt.f32.partialorder %v619, 0.0
  %vm710 = vcmp.gt.f32.partialorder %v622, 0.0
  %vm711 = vcmp.gt.f32.partialorder %v627, 0.0
  %vm712 = vcmp.gt.f32.partialorder %v630, 0.0
  %vm713 = vcmp.gt.f32.partialorder %v635, 0.0
  %vm714 = vcmp.gt.f32.partialorder %v638, 0.0
  %vm715 = vcmp.gt.f32.partialorder %v643, 0.0
  %vm716 = vcmp.gt.f32.partialorder %v646, 0.0
  %vm717 = vcmp.gt.f32.partialorder %v651, 0.0
  %vm718 = vcmp.gt.f32.partialorder %v654, 0.0
  %vm719 = vcmp.gt.f32.partialorder %v659, 0.0
  %vm720 = vcmp.gt.f32.partialorder %v662, 0.0
  %vm721 = vcmp.gt.f32.partialorder %v667, 0.0
  %vm722 = vcmp.gt.f32.partialorder %v670, 0.0
  %vm723 = vcmp.gt.f32.partialorder %v675, 0.0
  %vm724 = vcmp.gt.f32.partialorder %v678, 0.0
  %vm725 = vcmp.gt.f32.partialorder %v683, 0.0
  %vm726 = vcmp.gt.f32.partialorder %v686, 0.0
  %vm727 = vcmp.gt.f32.partialorder %v691, 0.0
  %vm728 = vcmp.gt.f32.partialorder %v694, 0.0
  %v729 = vmul.f32 %v571, 0.2
  %v730 = vmul.f32 %v574, 0.2
  %v731 = vmul.f32 %v579, 0.2
  %v732 = vmul.f32 %v582, 0.2
  %v733 = vmul.f32 %v587, 0.2
  %v734 = vmul.f32 %v590, 0.2
  %v735 = vmul.f32 %v595, 0.2
  %v736 = vmul.f32 %v598, 0.2
  %v737 = vmul.f32 %v603, 0.2
  %v738 = vmul.f32 %v606, 0.2
  %v739 = vmul.f32 %v611, 0.2
  %v740 = vmul.f32 %v614, 0.2
  %v741 = vmul.f32 %v619, 0.2
  %v742 = vmul.f32 %v622, 0.2
  %v743 = vmul.f32 %v627, 0.2
  %v744 = vmul.f32 %v630, 0.2
  %v745 = vmul.f32 %v635, 0.2
  %v746 = vmul.f32 %v638, 0.2
  %v747 = vmul.f32 %v643, 0.2
  %v748 = vmul.f32 %v646, 0.2
  %v749 = vmul.f32 %v651, 0.2
  %v750 = vmul.f32 %v654, 0.2
  %v751 = vmul.f32 %v659, 0.2
  %v752 = vmul.f32 %v662, 0.2
  %v753 = vmul.f32 %v667, 0.2
  %v754 = vmul.f32 %v670, 0.2
  %v755 = vmul.f32 %v675, 0.2
  %v756 = vmul.f32 %v678, 0.2
  %v757 = vmul.f32 %v683, 0.2
  %v758 = vmul.f32 %v686, 0.2
  %v759 = vmul.f32 %v691, 0.2
  %v760 = vmul.f32 %v694, 0.2
  %v761 = vsel %vm697, %v571, %v729
  %v762 = vsel %vm698, %v574, %v730
  %v763 = vsel %vm699, %v579, %v731
  %v764 = vsel %vm700, %v582, %v732
  %v765 = vsel %vm701, %v587, %v733
  %v766 = vsel %vm702, %v590, %v734
  %v767 = vsel %vm703, %v595, %v735
  %v768 = vsel %vm704, %v598, %v736
  %v769 = vsel %vm705, %v603, %v737
  %v770 = vsel %vm706, %v606, %v738
  %v771 = vsel %vm707, %v611, %v739
  %v772 = vsel %vm708, %v614, %v740
  %v773 = vsel %vm709, %v619, %v741
  %v774 = vsel %vm710, %v622, %v742
  %v775 = vsel %vm711, %v627, %v743
  %v776 = vsel %vm712, %v630, %v744
  %v777 = vsel %vm713, %v635, %v745
  %v778 = vsel %vm714, %v638, %v746
  %v779 = vsel %vm715, %v643, %v747
  %v780 = vsel %vm716, %v646, %v748
  %v781 = vsel %vm717, %v651, %v749
  %v782 = vsel %vm718, %v654, %v750
  %v783 = vsel %vm719, %v659, %v751
  %v784 = vsel %vm720, %v662, %v752
  %v785 = vsel %vm721, %v667, %v753
  %v786 = vsel %vm722, %v670, %v754
  %v787 = vsel %vm723, %v675, %v755
  %v788 = vsel %vm724, %v678, %v756
  %v789 = vsel %vm725, %v683, %v757
  %v790 = vsel %vm726, %v686, %v758
  %v791 = vsel %vm727, %v691, %v759
  %v792 = vsel %vm728, %v694, %v760
  %v793 = vpack.c.bf16 %v762, %v761
  %v794 = vpack.c.bf16 %v764, %v763
  %v795 = vpack.c.bf16 %v766, %v765
  %v796 = vpack.c.bf16 %v768, %v767
  %v797 = vpack.c.bf16 %v770, %v769
  %v798 = vpack.c.bf16 %v772, %v771
  %v799 = vpack.c.bf16 %v774, %v773
  %v800 = vpack.c.bf16 %v776, %v775
  %v801 = vpack.c.bf16 %v778, %v777
  %v802 = vpack.c.bf16 %v780, %v779
  %v803 = vpack.c.bf16 %v782, %v781
  %v804 = vpack.c.bf16 %v784, %v783
  %v805 = vpack.c.bf16 %v786, %v785
  %v806 = vpack.c.bf16 %v788, %v787
  %v807 = vpack.c.bf16 %v790, %v789
  %v808 = vpack.c.bf16 %v792, %v791
  %v809 = vld [vmem:[%s3] sm:$0xf]
  %v810 = vld [vmem:[%s3 + $0x4] sm:$0xf]
  %v811 = vld [vmem:[%s3 + $0x8] sm:$0xf]
  %v812 = vld [vmem:[%s3 + $0xc] sm:$0xf]
  %v813 = vld [vmem:[%s3 + $0x10] sm:$0xf]
  %v814 = vld [vmem:[%s3 + $0x14] sm:$0xf]
  %v815 = vld [vmem:[%s3 + $0x18] sm:$0xf]
  %v816 = vld [vmem:[%s3 + $0x1c] sm:$0xf]
  %v817 = vld [vmem:[%s3 + $0x20] sm:$0xf]
  %v818 = vld [vmem:[%s3 + $0x24] sm:$0xf]
  %v819 = vld [vmem:[%s3 + $0x28] sm:$0xf]
  %v820 = vld [vmem:[%s3 + $0x2c] sm:$0xf]
  %v821 = vld [vmem:[%s3 + $0x30] sm:$0xf]
  %v822 = vld [vmem:[%s3 + $0x34] sm:$0xf]
  %v823 = vld [vmem:[%s3 + $0x38] sm:$0xf]
  %v824 = vld [vmem:[%s3 + $0x3c] sm:$0xf]
  %v825 = vlaneseq
  %v826 = vshrl.u32 %v825, 7
  %v827 = vsub.s32 2, %v826
  %v828 = vrot.slane %v53, %v827
  %v845 = vunpack.c.l.b16 %v809
  %v846 = vunpack.c.l.b16 %v810
  %v847 = vunpack.c.l.b16 %v811
  %v848 = vunpack.c.l.b16 %v812
  %v849 = vunpack.c.l.b16 %v813
  %v850 = vunpack.c.l.b16 %v814
  %v851 = vunpack.c.l.b16 %v815
  %v852 = vunpack.c.l.b16 %v816
  %v853 = vunpack.c.l.b16 %v817
  %v854 = vunpack.c.l.b16 %v818
  %v855 = vunpack.c.l.b16 %v819
  %v856 = vunpack.c.l.b16 %v820
  %v857 = vunpack.c.l.b16 %v821
  %v858 = vunpack.c.l.b16 %v822
  %v859 = vunpack.c.l.b16 %v823
  %v860 = vunpack.c.l.b16 %v824
  %v861 = vpack.c.b16 %v846, %v845
  %v862 = vpack.c.b16 %v848, %v847
  %v863 = vpack.c.b16 %v850, %v849
  %v864 = vpack.c.b16 %v852, %v851
  %v865 = vpack.c.b16 %v854, %v853
  %v866 = vpack.c.b16 %v856, %v855
  %v867 = vpack.c.b16 %v858, %v857
  %v868 = vpack.c.b16 %v860, %v859
  %877 = vmatprep.subr.bf16.mxu0 0
  %878 = vmatpush1.bf16.msra.mxu0 %v861
  %879 = vmatprep.subr.bf16.mxu0 0
  %880 = vmatpush1.bf16.msra.mxu0 %v862
  %881 = vmatprep.subr.bf16.mxu0 0
  %882 = vmatpush1.bf16.msra.mxu0 %v863
  %883 = vmatprep.subr.bf16.mxu0 0
  %884 = vmatpush1.bf16.msra.mxu0 %v864
  %885 = vmatprep.subr.bf16.mxu0 0
  %886 = vmatpush1.bf16.msra.mxu0 %v865
  %887 = vmatprep.subr.bf16.mxu0 0
  %888 = vmatpush1.bf16.msra.mxu0 %v866
  %889 = vmatprep.subr.bf16.mxu0 0
  %890 = vmatpush1.bf16.msra.mxu0 %v867
  %891 = vmatprep.subr.bf16.mxu0 0
  %892 = vmatpush1.bf16.msra.mxu0 %v868
  %893 = vmatprep.subr.bf16.mxu0 0
  %894 = vmatpush1.bf16.msra.mxu0 0
  %895 = vmatprep.subr.bf16.mxu0 0
  %896 = vmatpush1.bf16.msra.mxu0 0
  %897 = vmatprep.subr.bf16.mxu0 0
  %898 = vmatpush1.bf16.msra.mxu0 0
  %899 = vmatprep.subr.bf16.mxu0 0
  %900 = vmatpush1.bf16.msra.mxu0 0
  %901 = vmatprep.subr.bf16.mxu0 0
  %902 = vmatpush1.bf16.msra.mxu0 0
  %903 = vmatprep.subr.bf16.mxu0 0
  %904 = vmatpush1.bf16.msra.mxu0 0
  %905 = vmatprep.subr.bf16.mxu0 0
  %906 = vmatpush1.bf16.msra.mxu0 0
  %907 = vmatprep.subr.bf16.mxu0 0
  %908 = vmatpush1.bf16.msra.mxu0 0
  %909 = vmatprep.mubr.bf16.mxu0 0
  %910 = vmatmul.mubr.bf16.gmra.mrb[0].mxu0 %v793
  %v911 = vpop.f32.mrb[0].mxu0
  %v912 = vadd.f32 %v828, %v911
  %v913 = vpop.f32.mrb[0].mxu0
  %v914 = vpop.f32.mrb[0].mxu0
  %v915 = vadd.f32 %v828, %v914
  %v916 = vpop.f32.mrb[0].mxu0
  %917 = vmatprep.mubr.bf16.mxu0 0
  %918 = vmatmul.mubr.bf16.gmra.mrb[0].mxu0 %v794
  %v919 = vpop.f32.mrb[0].mxu0
  %v920 = vadd.f32 %v828, %v919
  %v921 = vpop.f32.mrb[0].mxu0
  %v922 = vpop.f32.mrb[0].mxu0
  %v923 = vadd.f32 %v828, %v922
  %v924 = vpop.f32.mrb[0].mxu0
  %925 = vmatprep.mubr.bf16.mxu0 0
  %926 = vmatmul.mubr.bf16.gmra.mrb[0].mxu0 %v795
  %v927 = vpop.f32.mrb[0].mxu0
  %v928 = vadd.f32 %v828, %v927
  %v929 = vpop.f32.mrb[0].mxu0
  %v930 = vpop.f32.mrb[0].mxu0
  %v931 = vadd.f32 %v828, %v930
  %v932 = vpop.f32.mrb[0].mxu0
  %933 = vmatprep.mubr.bf16.mxu0 0
  %934 = vmatmul.mubr.bf16.gmra.mrb[0].mxu0 %v796
  %v935 = vpop.f32.mrb[0].mxu0
  %v936 = vadd.f32 %v828, %v935
  %v937 = vpop.f32.mrb[0].mxu0
  %v938 = vpop.f32.mrb[0].mxu0
  %v939 = vadd.f32 %v828, %v938
  %v940 = vpop.f32.mrb[0].mxu0
  %941 = vmatprep.mubr.bf16.mxu0 0
  %942 = vmatmul.mubr.bf16.gmra.mrb[0].mxu0 %v797
  %v943 = vpop.f32.mrb[0].mxu0
  %v944 = vadd.f32 %v828, %v943
  %v945 = vpop.f32.mrb[0].mxu0
  %v946 = vpop.f32.mrb[0].mxu0
  %v947 = vadd.f32 %v828, %v946
  %v948 = vpop.f32.mrb[0].mxu0
  %949 = vmatprep.mubr.bf16.mxu0 0
  %950 = vmatmul.mubr.bf16.gmra.mrb[0].mxu0 %v798
  %v951 = vpop.f32.mrb[0].mxu0
  %v952 = vadd.f32 %v828, %v951
  %v953 = vpop.f32.mrb[0].mxu0
  %v954 = vpop.f32.mrb[0].mxu0
  %v955 = vadd.f32 %v828, %v954
  %v956 = vpop.f32.mrb[0].mxu0
  %957 = vmatprep.mubr.bf16.mxu0 0
  %958 = vmatmul.mubr.bf16.gmra.mrb[0].mxu0 %v799
  %v959 = vpop.f32.mrb[0].mxu0
  %v960 = vadd.f32 %v828, %v959
  %v961 = vpop.f32.mrb[0].mxu0
  %v962 = vpop.f32.mrb[0].mxu0
  %v963 = vadd.f32 %v828, %v962
  %v964 = vpop.f32.mrb[0].mxu0
  %965 = vmatprep.mubr.bf16.mxu0 0
  %966 = vmatmul.mubr.bf16.gmra.mrb[0].mxu0 %v800
  %v967 = vpop.f32.mrb[0].mxu0
  %v968 = vadd.f32 %v828, %v967
  %v969 = vpop.f32.mrb[0].mxu0
  %v970 = vpop.f32.mrb[0].mxu0
  %v971 = vadd.f32 %v828, %v970
  %v972 = vpop.f32.mrb[0].mxu0
  %973 = vmatprep.mubr.bf16.mxu0 0
  %974 = vmatmul.mubr.bf16.gmra.mrb[0].mxu0 %v801
  %v975 = vpop.f32.mrb[0].mxu0
  %v976 = vadd.f32 %v828, %v975
  %v977 = vpop.f32.mrb[0].mxu0
  %v978 = vpop.f32.mrb[0].mxu0
  %v979 = vadd.f32 %v828, %v978
  %v980 = vpop.f32.mrb[0].mxu0
  %981 = vmatprep.mubr.bf16.mxu0 0
  %982 = vmatmul.mubr.bf16.gmra.mrb[0].mxu0 %v802
  %v983 = vpop.f32.mrb[0].mxu0
  %v984 = vadd.f32 %v828, %v983
  %v985 = vpop.f32.mrb[0].mxu0
  %v986 = vpop.f32.mrb[0].mxu0
  %v987 = vadd.f32 %v828, %v986
  %v988 = vpop.f32.mrb[0].mxu0
  %989 = vmatprep.mubr.bf16.mxu0 0
  %990 = vmatmul.mubr.bf16.gmra.mrb[0].mxu0 %v803
  %v991 = vpop.f32.mrb[0].mxu0
  %v992 = vadd.f32 %v828, %v991
  %v993 = vpop.f32.mrb[0].mxu0
  %v994 = vpop.f32.mrb[0].mxu0
  %v995 = vadd.f32 %v828, %v994
  %v996 = vpop.f32.mrb[0].mxu0
  %997 = vmatprep.mubr.bf16.mxu0 0
  %998 = vmatmul.mubr.bf16.gmra.mrb[0].mxu0 %v804
  %v999 = vpop.f32.mrb[0].mxu0
  %v1000 = vadd.f32 %v828, %v999
  %v1001 = vpop.f32.mrb[0].mxu0
  %v1002 = vpop.f32.mrb[0].mxu0
  %v1003 = vadd.f32 %v828, %v1002
  %v1004 = vpop.f32.mrb[0].mxu0
  %1005 = vmatprep.mubr.bf16.mxu0 0
  %1006 = vmatmul.mubr.bf16.gmra.mrb[0].mxu0 %v805
  %v1007 = vpop.f32.mrb[0].mxu0
  %v1008 = vadd.f32 %v828, %v1007
  %v1009 = vpop.f32.mrb[0].mxu0
  %v1010 = vpop.f32.mrb[0].mxu0
  %v1011 = vadd.f32 %v828, %v1010
  %v1012 = vpop.f32.mrb[0].mxu0
  %1013 = vmatprep.mubr.bf16.mxu0 0
  %1014 = vmatmul.mubr.bf16.gmra.mrb[0].mxu0 %v806
  %v1015 = vpop.f32.mrb[0].mxu0
  %v1016 = vadd.f32 %v828, %v1015
  %v1017 = vpop.f32.mrb[0].mxu0
  %v1018 = vpop.f32.mrb[0].mxu0
  %v1019 = vadd.f32 %v828, %v1018
  %v1020 = vpop.f32.mrb[0].mxu0
  %1021 = vmatprep.mubr.bf16.mxu0 0
  %1022 = vmatmul.mubr.bf16.gmra.mrb[0].mxu0 %v807
  %v1023 = vpop.f32.mrb[0].mxu0
  %v1024 = vadd.f32 %v828, %v1023
  %v1025 = vpop.f32.mrb[0].mxu0
  %v1026 = vpop.f32.mrb[0].mxu0
  %v1027 = vadd.f32 %v828, %v1026
  %v1028 = vpop.f32.mrb[0].mxu0
  %1029 = vmatprep.mubr.bf16.mxu0 0
  %1030 = vmatmul.mubr.bf16.gmra.mrb[0].mxu0 %v808
  %v1031 = vpop.f32.mrb[0].mxu0
  %v1032 = vadd.f32 %v828, %v1031
  %v1033 = vpop.f32.mrb[0].mxu0
  %v1034 = vpop.f32.mrb[0].mxu0
  %v1035 = vadd.f32 %v828, %v1034
  %v1036 = vpop.f32.mrb[0].mxu0
  %1037 = vdwg.mxu0
  %v1038 = vsub.f32 0.0, %v912
  %v1039 = vsub.f32 0.0, %v915
  %v1040 = vsub.f32 0.0, %v920
  %v1041 = vsub.f32 0.0, %v923
  %v1042 = vsub.f32 0.0, %v928
  %v1043 = vsub.f32 0.0, %v931
  %v1044 = vsub.f32 0.0, %v936
  %v1045 = vsub.f32 0.0, %v939
  %v1046 = vsub.f32 0.0, %v944
  %v1047 = vsub.f32 0.0, %v947
  %v1048 = vsub.f32 0.0, %v952
  %v1049 = vsub.f32 0.0, %v955
  %v1050 = vsub.f32 0.0, %v960
  %v1051 = vsub.f32 0.0, %v963
  %v1052 = vsub.f32 0.0, %v968
  %v1053 = vsub.f32 0.0, %v971
  %v1054 = vsub.f32 0.0, %v976
  %v1055 = vsub.f32 0.0, %v979
  %v1056 = vsub.f32 0.0, %v984
  %v1057 = vsub.f32 0.0, %v987
  %v1058 = vsub.f32 0.0, %v992
  %v1059 = vsub.f32 0.0, %v995
  %v1060 = vsub.f32 0.0, %v1000
  %v1061 = vsub.f32 0.0, %v1003
  %v1062 = vsub.f32 0.0, %v1008
  %v1063 = vsub.f32 0.0, %v1011
  %v1064 = vsub.f32 0.0, %v1016
  %v1065 = vsub.f32 0.0, %v1019
  %v1066 = vsub.f32 0.0, %v1024
  %v1067 = vsub.f32 0.0, %v1027
  %v1068 = vsub.f32 0.0, %v1032
  %v1069 = vsub.f32 0.0, %v1035
  %v1070 = vmul.f32 %v1038, 1.442695
  %v1071 = vpow.pop %v1070
  %v1072 = vmul.f32 %v1039, 1.442695
  %v1073 = vpow.pop %v1072
  %v1074 = vmul.f32 %v1040, 1.442695
  %v1075 = vpow.pop %v1074
  %v1076 = vmul.f32 %v1041, 1.442695
  %v1077 = vpow.pop %v1076
  %v1078 = vmul.f32 %v1042, 1.442695
  %v1079 = vpow.pop %v1078
  %v1080 = vmul.f32 %v1043, 1.442695
  %v1081 = vpow.pop %v1080
  %v1082 = vmul.f32 %v1044, 1.442695
  %v1083 = vpow.pop %v1082
  %v1084 = vmul.f32 %v1045, 1.442695
  %v1085 = vpow.pop %v1084
  %v1086 = vmul.f32 %v1046, 1.442695
  %v1087 = vpow.pop %v1086
  %v1088 = vmul.f32 %v1047, 1.442695
  %v1089 = vpow.pop %v1088
  %v1090 = vmul.f32 %v1048, 1.442695
  %v1091 = vpow.pop %v1090
  %v1092 = vmul.f32 %v1049, 1.442695
  %v1093 = vpow.pop %v1092
  %v1094 = vmul.f32 %v1050, 1.442695
  %v1095 = vpow.pop %v1094
  %v1096 = vmul.f32 %v1051, 1.442695
  %v1097 = vpow.pop %v1096
  %v1098 = vmul.f32 %v1052, 1.442695
  %v1099 = vpow.pop %v1098
  %v1100 = vmul.f32 %v1053, 1.442695
  %v1101 = vpow.pop %v1100
  %v1102 = vmul.f32 %v1054, 1.442695
  %v1103 = vpow.pop %v1102
  %v1104 = vmul.f32 %v1055, 1.442695
  %v1105 = vpow.pop %v1104
  %v1106 = vmul.f32 %v1056, 1.442695
  %v1107 = vpow.pop %v1106
  %v1108 = vmul.f32 %v1057, 1.442695
  %v1109 = vpow.pop %v1108
  %v1110 = vmul.f32 %v1058, 1.442695
  %v1111 = vpow.pop %v1110
  %v1112 = vmul.f32 %v1059, 1.442695
  %v1113 = vpow.pop %v1112
  %v1114 = vmul.f32 %v1060, 1.442695
  %v1115 = vpow.pop %v1114
  %v1116 = vmul.f32 %v1061, 1.442695
  %v1117 = vpow.pop %v1116
  %v1118 = vmul.f32 %v1062, 1.442695
  %v1119 = vpow.pop %v1118
  %v1120 = vmul.f32 %v1063, 1.442695
  %v1121 = vpow.pop %v1120
  %v1122 = vmul.f32 %v1064, 1.442695
  %v1123 = vpow.pop %v1122
  %v1124 = vmul.f32 %v1065, 1.442695
  %v1125 = vpow.pop %v1124
  %v1126 = vmul.f32 %v1066, 1.442695
  %v1127 = vpow.pop %v1126
  %v1128 = vmul.f32 %v1067, 1.442695
  %v1129 = vpow.pop %v1128
  %v1130 = vmul.f32 %v1068, 1.442695
  %v1131 = vpow.pop %v1130
  %v1132 = vmul.f32 %v1069, 1.442695
  %v1133 = vpow.pop %v1132
  %v1134 = vadd.f32 %v1071, 1.0
  %v1135 = vadd.f32 %v1073, 1.0
  %v1136 = vadd.f32 %v1075, 1.0
  %v1137 = vadd.f32 %v1077, 1.0
  %v1138 = vadd.f32 %v1079, 1.0
  %v1139 = vadd.f32 %v1081, 1.0
  %v1140 = vadd.f32 %v1083, 1.0
  %v1141 = vadd.f32 %v1085, 1.0
  %v1142 = vadd.f32 %v1087, 1.0
  %v1143 = vadd.f32 %v1089, 1.0
  %v1144 = vadd.f32 %v1091, 1.0
  %v1145 = vadd.f32 %v1093, 1.0
  %v1146 = vadd.f32 %v1095, 1.0
  %v1147 = vadd.f32 %v1097, 1.0
  %v1148 = vadd.f32 %v1099, 1.0
  %v1149 = vadd.f32 %v1101, 1.0
  %v1150 = vadd.f32 %v1103, 1.0
  %v1151 = vadd.f32 %v1105, 1.0
  %v1152 = vadd.f32 %v1107, 1.0
  %v1153 = vadd.f32 %v1109, 1.0
  %v1154 = vadd.f32 %v1111, 1.0
  %v1155 = vadd.f32 %v1113, 1.0
  %v1156 = vadd.f32 %v1115, 1.0
  %v1157 = vadd.f32 %v1117, 1.0
  %v1158 = vadd.f32 %v1119, 1.0
  %v1159 = vadd.f32 %v1121, 1.0
  %v1160 = vadd.f32 %v1123, 1.0
  %v1161 = vadd.f32 %v1125, 1.0
  %v1162 = vadd.f32 %v1127, 1.0
  %v1163 = vadd.f32 %v1129, 1.0
  %v1164 = vadd.f32 %v1131, 1.0
  %v1165 = vadd.f32 %v1133, 1.0
  %v1166 = vrcp.pop %v1134
  %v1167 = vrcp.pop %v1135
  %v1168 = vrcp.pop %v1136
  %v1169 = vrcp.pop %v1137
  %v1170 = vrcp.pop %v1138
  %v1171 = vrcp.pop %v1139
  %v1172 = vrcp.pop %v1140
  %v1173 = vrcp.pop %v1141
  %v1174 = vrcp.pop %v1142
  %v1175 = vrcp.pop %v1143
  %v1176 = vrcp.pop %v1144
  %v1177 = vrcp.pop %v1145
  %v1178 = vrcp.pop %v1146
  %v1179 = vrcp.pop %v1147
  %v1180 = vrcp.pop %v1148
  %v1181 = vrcp.pop %v1149
  %v1182 = vrcp.pop %v1150
  %v1183 = vrcp.pop %v1151
  %v1184 = vrcp.pop %v1152
  %v1185 = vrcp.pop %v1153
  %v1186 = vrcp.pop %v1154
  %v1187 = vrcp.pop %v1155
  %v1188 = vrcp.pop %v1156
  %v1189 = vrcp.pop %v1157
  %v1190 = vrcp.pop %v1158
  %v1191 = vrcp.pop %v1159
  %v1192 = vrcp.pop %v1160
  %v1193 = vrcp.pop %v1161
  %v1194 = vrcp.pop %v1162
  %v1195 = vrcp.pop %v1163
  %v1196 = vrcp.pop %v1164
  %v1197 = vrcp.pop %v1165
  %v1198 = vmin.f32 %v1166, 1.0
  %v1199 = vmin.f32 %v1167, 1.0
  %v1200 = vmin.f32 %v1168, 1.0
  %v1201 = vmin.f32 %v1169, 1.0
  %v1202 = vmin.f32 %v1170, 1.0
  %v1203 = vmin.f32 %v1171, 1.0
  %v1204 = vmin.f32 %v1172, 1.0
  %v1205 = vmin.f32 %v1173, 1.0
  %v1206 = vmin.f32 %v1174, 1.0
  %v1207 = vmin.f32 %v1175, 1.0
  %v1208 = vmin.f32 %v1176, 1.0
  %v1209 = vmin.f32 %v1177, 1.0
  %v1210 = vmin.f32 %v1178, 1.0
  %v1211 = vmin.f32 %v1179, 1.0
  %v1212 = vmin.f32 %v1180, 1.0
  %v1213 = vmin.f32 %v1181, 1.0
  %v1214 = vmin.f32 %v1182, 1.0
  %v1215 = vmin.f32 %v1183, 1.0
  %v1216 = vmin.f32 %v1184, 1.0
  %v1217 = vmin.f32 %v1185, 1.0
  %v1218 = vmin.f32 %v1186, 1.0
  %v1219 = vmin.f32 %v1187, 1.0
  %v1220 = vmin.f32 %v1188, 1.0
  %v1221 = vmin.f32 %v1189, 1.0
  %v1222 = vmin.f32 %v1190, 1.0
  %v1223 = vmin.f32 %v1191, 1.0
  %v1224 = vmin.f32 %v1192, 1.0
  %v1225 = vmin.f32 %v1193, 1.0
  %v1226 = vmin.f32 %v1194, 1.0
  %v1227 = vmin.f32 %v1195, 1.0
  %v1228 = vmin.f32 %v1196, 1.0
  %v1229 = vmin.f32 %v1197, 1.0
  %1230 = vst [vmem:[%s5] sm:$0xff] %v1198
  %1231 = vst [vmem:[%s5 + $0x8] sm:$0xff] %v1199
  %1232 = vst [vmem:[%s5 + $0x10] sm:$0xff] %v1200
  %1233 = vst [vmem:[%s5 + $0x18] sm:$0xff] %v1201
  %1234 = vst [vmem:[%s5 + $0x20] sm:$0xff] %v1202
  %1235 = vst [vmem:[%s5 + $0x28] sm:$0xff] %v1203
  %1236 = vst [vmem:[%s5 + $0x30] sm:$0xff] %v1204
  %1237 = vst [vmem:[%s5 + $0x38] sm:$0xff] %v1205
  %1238 = vst [vmem:[%s5 + $0x40] sm:$0xff] %v1206
  %1239 = vst [vmem:[%s5 + $0x48] sm:$0xff] %v1207
  %1240 = vst [vmem:[%s5 + $0x50] sm:$0xff] %v1208
  %1241 = vst [vmem:[%s5 + $0x58] sm:$0xff] %v1209
  %1242 = vst [vmem:[%s5 + $0x60] sm:$0xff] %v1210
  %1243 = vst [vmem:[%s5 + $0x68] sm:$0xff] %v1211
  %1244 = vst [vmem:[%s5 + $0x70] sm:$0xff] %v1212
  %1245 = vst [vmem:[%s5 + $0x78] sm:$0xff] %v1213
  %1246 = vst [vmem:[%s5 + $0x80] sm:$0xff] %v1214
  %1247 = vst [vmem:[%s5 + $0x88] sm:$0xff] %v1215
  %1248 = vst [vmem:[%s5 + $0x90] sm:$0xff] %v1216
  %1249 = vst [vmem:[%s5 + $0x98] sm:$0xff] %v1217
  %1250 = vst [vmem:[%s5 + $0xa0] sm:$0xff] %v1218
  %1251 = vst [vmem:[%s5 + $0xa8] sm:$0xff] %v1219
  %1252 = vst [vmem:[%s5 + $0xb0] sm:$0xff] %v1220
  %1253 = vst [vmem:[%s5 + $0xb8] sm:$0xff] %v1221
  %1254 = vst [vmem:[%s5 + $0xc0] sm:$0xff] %v1222
  %1255 = vst [vmem:[%s5 + $0xc8] sm:$0xff] %v1223
  %1256 = vst [vmem:[%s5 + $0xd0] sm:$0xff] %v1224
  %1257 = vst [vmem:[%s5 + $0xd8] sm:$0xff] %v1225
  %1258 = vst [vmem:[%s5 + $0xe0] sm:$0xff] %v1226
  %1259 = vst [vmem:[%s5 + $0xe8] sm:$0xff] %v1227
  %1260 = vst [vmem:[%s5 + $0xf0] sm:$0xff] %v1228
  %1261 = vst [vmem:[%s5 + $0xf8] sm:$0xff] %v1229
  // Predicated region
  $region22: #{decoder_forward.1} parent=0 // pred_check
    _
  $region23: #{decoder_forward.1} parent=0 // pred_check_branch
    %1263 = sbr.rel (0) target = $region25
  $region24: #{decoder_forward.1} parent=0 // pred_region
    _
  $region25: #{decoder_forward.1} parent=0 // pred_fallthru
    _
  // Predicated region
  $region26: #{decoder_forward.1} parent=0 // pred_check
    _
  $region27: #{decoder_forward.1} parent=0 // pred_check_branch
    %1265 = sbr.rel (0) target = $region29
  $region28: #{decoder_forward.1} parent=0 // pred_region
    _
  $region29: #{decoder_forward.1} parent=0 // pred_fallthru
    _

</llo_original>
